<compile_context>
chip_gen: v7x
topology: tpu7x:2x2x1
jax: 0.10.0
libtpu: 0.0.40
codegen_flags: <defaults>
</compile_context>

<pallas_src>
import jax
import jax.numpy as jnp
from jax.experimental import pallas as pl
from jax.experimental.pallas import tpu as pltpu


def mlp_kernel(x_ref,
               w1_ref, b1_ref,
               w2_ref, b2_ref,
               w3_ref, b3_ref,
               w4_ref, b4_ref,
               o_ref):
    # x_ref: (5, TILE_B) feature-major tile of the batch.
    x = x_ref[...]
    # Layer 1: (8,5) @ (5,TB) + (8,1) -> ReLU
    h = jnp.dot(w1_ref[...], x, preferred_element_type=jnp.float32) + b1_ref[...]
    h = jnp.maximum(h, 0.0)
    # Layer 2: (16,8) @ (8,TB) + (16,1) -> ReLU
    h = jnp.dot(w2_ref[...], h, preferred_element_type=jnp.float32) + b2_ref[...]
    h = jnp.maximum(h, 0.0)
    # Layer 3: (4,16) @ (16,TB) + (4,1) -> ReLU
    h = jnp.dot(w3_ref[...], h, preferred_element_type=jnp.float32) + b3_ref[...]
    h = jnp.maximum(h, 0.0)
    # Layer 4 (no activation): (1,4) @ (4,TB) + (1,1)
    h = jnp.dot(w4_ref[...], h, preferred_element_type=jnp.float32) + b4_ref[...]
    # Lane-dense store: last dim is TILE_B (multiple of 128) -> unmasked full-line vst.
    o_ref[...] = h.astype(o_ref.dtype)


def bmodel_forward(x, params, tile_b=512):
    """x: (B, 5) float32; params: weights (out,in), biases (out,1). Returns (B, 1)."""
    B = x.shape[0]
    # Batch lives on lanes: tile must be a multiple of 128; don't over-allocate tiny batches.
    tile_b = max(128, min(tile_b, pl.cdiv(B, 128) * 128))
    b_pad = pl.cdiv(B, tile_b) * tile_b
    # Pad the tail tile in the wrapper (cheap layout plumbing), transpose to (features, batch).
    xt = jnp.pad(x, ((0, b_pad - B), (0, 0))).T  # (5, b_pad)

    def full_spec(arr):
        # Full-array block, constant index_map -> stays resident in VMEM (no re-DMA per step).
        return pl.BlockSpec(arr.shape, lambda i: (0, 0))

    in_specs = [
        pl.BlockSpec((5, tile_b), lambda i: (0, i)),          # streamed input tile
        full_spec(params["w1"]), full_spec(params["b1"]),
        full_spec(params["w2"]), full_spec(params["b2"]),
        full_spec(params["w3"]), full_spec(params["b3"]),
        full_spec(params["w4"]), full_spec(params["b4"]),
    ]

    out = pl.pallas_call(
        mlp_kernel,
        out_shape=jax.ShapeDtypeStruct((1, b_pad), jnp.float32),
        grid=(b_pad // tile_b,),
        in_specs=in_specs,
        out_specs=pl.BlockSpec((1, tile_b), lambda i: (0, i)),  # lane-dense output tile
        compiler_params=pltpu.CompilerParams(
            dimension_semantics=("parallel",),                  # megacore sharding on v7x
        ),
    )(xt,
      params["w1"], params["b1"],
      params["w2"], params["b2"],
      params["w3"], params["b3"],
      params["w4"], params["b4"])

    # Drop batch padding, return (B, 1) to match the PyTorch module's output layout.
    return out[:, :B].T


def init_params(key):
    """Deterministic synthetic init matching nn.Linear shapes: W (out,in), b (out,1)."""
    dims = [(5, 8), (8, 16), (16, 4), (4, 1)]
    params = {}
    for idx, (fan_in, fan_out) in enumerate(dims, start=1):
        key, kw, kb = jax.random.split(key, 3)
        bound = 1.0 / jnp.sqrt(fan_in)
        params[f"w{idx}"] = jax.random.uniform(
            kw, (fan_out, fan_in), jnp.float32, minval=-bound, maxval=bound)
        params[f"b{idx}"] = jax.random.uniform(
            kb, (fan_out, 1), jnp.float32, minval=-bound, maxval=bound)
    return params


def reference_forward(x, p):
    h = jnp.maximum(x @ p["w1"].T + p["b1"].T, 0.0)
    h = jnp.maximum(h @ p["w2"].T + p["b2"].T, 0.0)
    h = jnp.maximum(h @ p["w3"].T + p["b3"].T, 0.0)
    return h @ p["w4"].T + p["b4"].T


if __name__ == "__main__":
    key = jax.random.PRNGKey(0)
    key, kx = jax.random.split(key)
    batch = 8
    x = jax.random.normal(kx, (batch, 5), dtype=jnp.float32)
    params = init_params(key)

    out = bmodel_forward(x, params)
    out = jax.block_until_ready(out)

    ref = reference_forward(x, params)
    assert out.shape == (batch, 1)
    assert jnp.allclose(out, ref, atol=1e-5, rtol=1e-5)
    print("KERNEL_OK")
</pallas_src>

<mosaic_0001>
module attributes {stable_mosaic.version = 11 : i64} {
  func.func @mlp_kernel(%arg0: i32, %arg1: memref<5x128xf32, #tpu.memory_space<vmem>>, %arg2: memref<8x5xf32, #tpu.memory_space<vmem>>, %arg3: memref<8x1xf32, #tpu.memory_space<vmem>>, %arg4: memref<16x8xf32, #tpu.memory_space<vmem>>, %arg5: memref<16x1xf32, #tpu.memory_space<vmem>>, %arg6: memref<4x16xf32, #tpu.memory_space<vmem>>, %arg7: memref<4x1xf32, #tpu.memory_space<vmem>>, %arg8: memref<1x4xf32, #tpu.memory_space<vmem>>, %arg9: memref<1x1xf32, #tpu.memory_space<vmem>>, %arg10: memref<1x128xf32, #tpu.memory_space<vmem>>) attributes {dimension_semantics = [#tpu.dimension_semantics<parallel>], iteration_bounds = array<i64: 1>, scalar_prefetch = 0 : i64, scratch_operands = 0 : i64, tpu.core_type = #tpu.core_type<tc>, window_params = [{transform_indices = @transform_0, window_bounds = array<i64: 5, 128>}, {pipeline_mode = #tpu.pipeline_mode<synchronous>, transform_indices = @transform_1, window_bounds = array<i64: 8, 5>}, {pipeline_mode = #tpu.pipeline_mode<synchronous>, transform_indices = @transform_2, window_bounds = array<i64: 8, 1>}, {pipeline_mode = #tpu.pipeline_mode<synchronous>, transform_indices = @transform_3, window_bounds = array<i64: 16, 8>}, {pipeline_mode = #tpu.pipeline_mode<synchronous>, transform_indices = @transform_4, window_bounds = array<i64: 16, 1>}, {pipeline_mode = #tpu.pipeline_mode<synchronous>, transform_indices = @transform_5, window_bounds = array<i64: 4, 16>}, {pipeline_mode = #tpu.pipeline_mode<synchronous>, transform_indices = @transform_6, window_bounds = array<i64: 4, 1>}, {pipeline_mode = #tpu.pipeline_mode<synchronous>, transform_indices = @transform_7, window_bounds = array<i64: 1, 4>}, {pipeline_mode = #tpu.pipeline_mode<synchronous>, transform_indices = @transform_8, window_bounds = array<i64: 1, 1>}, {transform_indices = @transform_9, window_bounds = array<i64: 1, 128>}]} {
    %c0 = arith.constant 0 : index
    %c0_0 = arith.constant 0 : index
    %0 = vector.load %arg1[%c0, %c0_0] : memref<5x128xf32, #tpu.memory_space<vmem>>, vector<5x128xf32>
    %c0_1 = arith.constant 0 : index
    %c0_2 = arith.constant 0 : index
    %1 = vector.load %arg2[%c0_1, %c0_2] : memref<8x5xf32, #tpu.memory_space<vmem>>, vector<8x5xf32>
    %cst = arith.constant dense<0.000000e+00> : vector<8x128xf32>
    %2 = tpu.matmul %1, %0, %cst {dimension_numbers = #tpu.dot_dimension_numbers<[1], [0], [0], [1], [0, 0, 1, 1], [], []>} : vector<8x5xf32>, vector<5x128xf32>, vector<8x128xf32> -> vector<8x128xf32>
    %c0_3 = arith.constant 0 : index
    %c0_4 = arith.constant 0 : index
    %3 = vector.load %arg3[%c0_3, %c0_4] : memref<8x1xf32, #tpu.memory_space<vmem>>, vector<8x1xf32>
    %4 = vector.broadcast %3 : vector<8x1xf32> to vector<8x128xf32>
    %5 = arith.addf %2, %4 : vector<8x128xf32>
    %cst_5 = arith.constant 0.000000e+00 : f32
    %6 = vector.broadcast %cst_5 : f32 to vector<8x128xf32>
    %7 = arith.maximumf %5, %6 : vector<8x128xf32>
    %c0_6 = arith.constant 0 : index
    %c0_7 = arith.constant 0 : index
    %8 = vector.load %arg4[%c0_6, %c0_7] : memref<16x8xf32, #tpu.memory_space<vmem>>, vector<16x8xf32>
    %cst_8 = arith.constant dense<0.000000e+00> : vector<16x128xf32>
    %9 = tpu.matmul %8, %7, %cst_8 {dimension_numbers = #tpu.dot_dimension_numbers<[1], [0], [0], [1], [0, 0, 1, 1], [], []>} : vector<16x8xf32>, vector<8x128xf32>, vector<16x128xf32> -> vector<16x128xf32>
    %c0_9 = arith.constant 0 : index
    %c0_10 = arith.constant 0 : index
    %10 = vector.load %arg5[%c0_9, %c0_10] : memref<16x1xf32, #tpu.memory_space<vmem>>, vector<16x1xf32>
    %11 = vector.broadcast %10 : vector<16x1xf32> to vector<16x128xf32>
    %12 = arith.addf %9, %11 : vector<16x128xf32>
    %cst_11 = arith.constant 0.000000e+00 : f32
    %13 = vector.broadcast %cst_11 : f32 to vector<16x128xf32>
    %14 = arith.maximumf %12, %13 : vector<16x128xf32>
    %c0_12 = arith.constant 0 : index
    %c0_13 = arith.constant 0 : index
    %15 = vector.load %arg6[%c0_12, %c0_13] : memref<4x16xf32, #tpu.memory_space<vmem>>, vector<4x16xf32>
    %cst_14 = arith.constant dense<0.000000e+00> : vector<4x128xf32>
    %16 = tpu.matmul %15, %14, %cst_14 {dimension_numbers = #tpu.dot_dimension_numbers<[1], [0], [0], [1], [0, 0, 1, 1], [], []>} : vector<4x16xf32>, vector<16x128xf32>, vector<4x128xf32> -> vector<4x128xf32>
    %c0_15 = arith.constant 0 : index
    %c0_16 = arith.constant 0 : index
    %17 = vector.load %arg7[%c0_15, %c0_16] : memref<4x1xf32, #tpu.memory_space<vmem>>, vector<4x1xf32>
    %18 = vector.broadcast %17 : vector<4x1xf32> to vector<4x128xf32>
    %19 = arith.addf %16, %18 : vector<4x128xf32>
    %cst_17 = arith.constant 0.000000e+00 : f32
    %20 = vector.broadcast %cst_17 : f32 to vector<4x128xf32>
    %21 = arith.maximumf %19, %20 : vector<4x128xf32>
    %c0_18 = arith.constant 0 : index
    %c0_19 = arith.constant 0 : index
    %22 = vector.load %arg8[%c0_18, %c0_19] : memref<1x4xf32, #tpu.memory_space<vmem>>, vector<1x4xf32>
    %cst_20 = arith.constant dense<0.000000e+00> : vector<1x128xf32>
    %23 = tpu.matmul %22, %21, %cst_20 {dimension_numbers = #tpu.dot_dimension_numbers<[1], [0], [0], [1], [0, 0, 1, 1], [], []>} : vector<1x4xf32>, vector<4x128xf32>, vector<1x128xf32> -> vector<1x128xf32>
    %c0_21 = arith.constant 0 : index
    %c0_22 = arith.constant 0 : index
    %24 = vector.load %arg9[%c0_21, %c0_22] : memref<1x1xf32, #tpu.memory_space<vmem>>, vector<1x1xf32>
    %25 = vector.broadcast %24 : vector<1x1xf32> to vector<1x128xf32>
    %26 = arith.addf %23, %25 : vector<1x128xf32>
    %c0_23 = arith.constant 0 : index
    %c0_24 = arith.constant 0 : index
    %27 = vector.load %arg10[%c0_23, %c0_24] : memref<1x128xf32, #tpu.memory_space<vmem>>, vector<1x128xf32>
    tpu.vector_store %arg10[%c0_23, %c0_24], %26 {strides = array<i32>} : memref<1x128xf32, #tpu.memory_space<vmem>>, vector<1x128xf32>,
    return
  }
  func.func @transform_0(%arg0: i32) -> (i32, i32) {
    %c0_i32 = arith.constant 0 : i32
    %c0_i32_0 = arith.constant 0 : i32
    return %c0_i32, %arg0 : i32, i32
  }
  func.func @transform_1(%arg0: i32) -> (i32, i32) {
    %c0_i32 = arith.constant 0 : i32
    %c0_i32_0 = arith.constant 0 : i32
    %c0_i32_1 = arith.constant 0 : i32
    return %c0_i32, %c0_i32_0 : i32, i32
  }
  func.func @transform_2(%arg0: i32) -> (i32, i32) {
    %c0_i32 = arith.constant 0 : i32
    %c0_i32_0 = arith.constant 0 : i32
    %c0_i32_1 = arith.constant 0 : i32
    return %c0_i32, %c0_i32_0 : i32, i32
  }
  func.func @transform_3(%arg0: i32) -> (i32, i32) {
    %c0_i32 = arith.constant 0 : i32
    %c0_i32_0 = arith.constant 0 : i32
    %c0_i32_1 = arith.constant 0 : i32
    return %c0_i32, %c0_i32_0 : i32, i32
  }
  func.func @transform_4(%arg0: i32) -> (i32, i32) {
    %c0_i32 = arith.constant 0 : i32
    %c0_i32_0 = arith.constant 0 : i32
    %c0_i32_1 = arith.constant 0 : i32
    return %c0_i32, %c0_i32_0 : i32, i32
  }
  func.func @transform_5(%arg0: i32) -> (i32, i32) {
    %c0_i32 = arith.constant 0 : i32
    %c0_i32_0 = arith.constant 0 : i32
    %c0_i32_1 = arith.constant 0 : i32
    return %c0_i32, %c0_i32_0 : i32, i32
  }
  func.func @transform_6(%arg0: i32) -> (i32, i32) {
    %c0_i32 = arith.constant 0 : i32
    %c0_i32_0 = arith.constant 0 : i32
    %c0_i32_1 = arith.constant 0 : i32
    return %c0_i32, %c0_i32_0 : i32, i32
  }
  func.func @transform_7(%arg0: i32) -> (i32, i32) {
    %c0_i32 = arith.constant 0 : i32
    %c0_i32_0 = arith.constant 0 : i32
    %c0_i32_1 = arith.constant 0 : i32
    return %c0_i32, %c0_i32_0 : i32, i32
  }
  func.func @transform_8(%arg0: i32) -> (i32, i32) {
    %c0_i32 = arith.constant 0 : i32
    %c0_i32_0 = arith.constant 0 : i32
    %c0_i32_1 = arith.constant 0 : i32
    return %c0_i32, %c0_i32_0 : i32, i32
  }
  func.func @transform_9(%arg0: i32) -> (i32, i32) {
    %c0_i32 = arith.constant 0 : i32
    %c0_i32_0 = arith.constant 0 : i32
    return %c0_i32, %arg0 : i32, i32
  }
}

</mosaic_0001>

<llo_original>
// kernel: tpu_custom_call.1
$region0: #{tpu_custom_call.1}
  #allocation0 [shape = 'u32[]', space=smem, size = 0x4, offset = 0x4, fixed_abs, tag = 'smem constant byte address 0x4 - core index']
  #allocation1 [shape = 'u32[144,128]{1,0:T(1,128)}', space=vmem, size = 0x12000, scoped, tag = 'internal scratch']
  #allocation2 [shape = 'f32[1,1]{1,0:T(1,128)S(1)}', space=vmem, size = 0x200, scoped, tag = 'scoped memory for tpu_custom_call.1']
  %s0 = inlined_call_operand.vmem [shape: f32[5,128], index: 0, kind: input, shape index: {}]
  %s1 = inlined_call_operand.vmem [shape: f32[8,5], index: 1, kind: input, shape index: {}]
  %s2 = inlined_call_operand.vmem [shape: f32[8,1], index: 2, kind: input, shape index: {}]
  %s3 = inlined_call_operand.vmem [shape: f32[16,8], index: 3, kind: input, shape index: {}]
  %s4 = inlined_call_operand.vmem [shape: f32[16,1], index: 4, kind: input, shape index: {}]
  %s5 = inlined_call_operand.vmem [shape: f32[4,16], index: 5, kind: input, shape index: {}]
  %s6 = inlined_call_operand.vmem [shape: f32[4,1], index: 6, kind: input, shape index: {}]
  %s7 = inlined_call_operand.vmem [shape: f32[1,4], index: 7, kind: input, shape index: {}]
  %s8 = inlined_call_operand.<no memory space> [shape: f32[1,1], index: 8, kind: input, shape index: {}]
  %s9 = inlined_call_operand.hbm [shape: f32[1,128], index: 9, kind: output, shape index: {}]
  %s10 = sld [smem:[#allocation0]]
  $region46: #{tpu_custom_call.1} parent=0
    _
  %s12 = ssub.s32 1, %s10
  %s13 = scalar_select 0, %s12, %s10
  %v14 = vstv %s8
  %15 = vst [vmem:[#allocation2] sm:$0x1] %v14
  $region1: #{tpu_custom_call.1} parent=0
    #allocation3 [shape = 'u8[512]{0}', space=vmem, size = 0x400, scoped, tag = 'output window, operand 0, single buffered']
    #allocation4 [shape = 's32[1]{0}', space=sflag, size = 0x4, scoped, tag = 'scoped memory for tpu_custom_call.1']
    %16 = vsyncpa [#allocation4], 0
    // Predicated region
    $region2: #{tpu_custom_call.1} parent=1 // pred_check
      _
    $region3: #{tpu_custom_call.1} parent=1 // pred_check_branch
      %18 = sbr.rel (0) target = $region5
    $region4: #{tpu_custom_call.1} parent=1 // pred_region
      _
    $region5: #{tpu_custom_call.1} parent=1 // pred_fallthru
      _
    // Predicated region
    $region6: #{tpu_custom_call.1} parent=1 // pred_check
      _
    $region7: #{tpu_custom_call.1} parent=1 // pred_check_branch
      %20 = sbr.rel (0) target = $region9
    $region8: #{tpu_custom_call.1} parent=1 // pred_region
      _
    $region9: #{tpu_custom_call.1} parent=1 // pred_fallthru
      _
    // Predicated region
    $region10: #{tpu_custom_call.1} parent=1 // pred_check
      _
    $region11: #{tpu_custom_call.1} parent=1 // pred_check_branch
      %22 = sbr.rel (0) target = $region13
    $region12: #{tpu_custom_call.1} parent=1 // pred_region
      _
    $region13: #{tpu_custom_call.1} parent=1 // pred_fallthru
      _
    // Predicated region
    $region14: #{tpu_custom_call.1} parent=1 // pred_check
      _
    $region15: #{tpu_custom_call.1} parent=1 // pred_check_branch
      %24 = sbr.rel (0) target = $region17
    $region16: #{tpu_custom_call.1} parent=1 // pred_region
      _
    $region17: #{tpu_custom_call.1} parent=1 // pred_fallthru
      _
    // Predicated region
    $region18: #{tpu_custom_call.1} parent=1 // pred_check
      _
    $region19: #{tpu_custom_call.1} parent=1 // pred_check_branch
      %26 = sbr.rel (0) target = $region21
    $region20: #{tpu_custom_call.1} parent=1 // pred_region
      _
    $region21: #{tpu_custom_call.1} parent=1 // pred_fallthru
      _
    // Predicated region
    $region22: #{tpu_custom_call.1} parent=1 // pred_check
      _
    $region23: #{tpu_custom_call.1} parent=1 // pred_check_branch
      %28 = sbr.rel (0) target = $region25
    $region24: #{tpu_custom_call.1} parent=1 // pred_region
      _
    $region25: #{tpu_custom_call.1} parent=1 // pred_fallthru
      _
    // Predicated region
    $region26: #{tpu_custom_call.1} parent=1 // pred_check
      _
    $region27: #{tpu_custom_call.1} parent=1 // pred_check_branch
      %30 = sbr.rel (0) target = $region29
    $region28: #{tpu_custom_call.1} parent=1 // pred_region
      _
    $region29: #{tpu_custom_call.1} parent=1 // pred_fallthru
      _
    // Predicated region
    $region30: #{tpu_custom_call.1} parent=1 // pred_check
      _
    $region31: #{tpu_custom_call.1} parent=1 // pred_check_branch
      %32 = sbr.rel (0) target = $region33
    $region32: #{tpu_custom_call.1} parent=1 // pred_region
      _
    $region33: #{tpu_custom_call.1} parent=1 // pred_fallthru
      _
    // Predicated region
    $region34: #{tpu_custom_call.1} parent=1 // pred_check
      _
    $region35: #{tpu_custom_call.1} parent=1 // pred_check_branch
      %34 = sbr.rel (0) target = $region37
    $region36: #{tpu_custom_call.1} parent=1 // pred_region
      _
    $region37: #{tpu_custom_call.1} parent=1 // pred_fallthru
      _
    %v35 = vld [vmem:[%s0] sm:$0x1f]
    %v36 = vld [vmem:[%s1] sm:$0xff]
    %v37 = vld [vmem:[%s2] sm:$0xff]
    %39 = vset.pattern.permute.xlu0 0
    %40 = vperm.xlu0 %39, %v37
    %v41 = vpop.permute.xlu0 %40
    %vm43 = vcmask 39936
    %v45 = vsel %vm43, %v36, 0
    %vm47 = vcmask 1044480
    %v49 = vsel %vm47, %v35, 0
    %51 = vmatprep.subr.mxu0 0.0
    %52 = vmatpush1.msra.mxu0 %v49
    %53 = vmatprep.subr.mxu0 0.0
    %54 = vmatpush1.msra.mxu0 0.0
    %55 = vmatprep.subr.mxu0 0.0
    %56 = vmatpush1.msra.mxu0 0.0
    %57 = vmatprep.subr.mxu0 0.0
    %58 = vmatpush1.msra.mxu0 0.0
    %59 = vmatprep.subr.mxu0 0.0
    %60 = vmatpush1.msra.mxu0 0.0
    %61 = vmatprep.subr.mxu0 0.0
    %62 = vmatpush1.msra.mxu0 0.0
    %63 = vmatprep.subr.mxu0 0.0
    %64 = vmatpush1.msra.mxu0 0.0
    %65 = vmatprep.subr.mxu0 0.0
    %66 = vmatpush1.msra.mxu0 0.0
    %67 = vmatprep.subr.mxu0 0.0
    %68 = vmatpush1.msra.mxu0 0.0
    %69 = vmatprep.subr.mxu0 0.0
    %70 = vmatpush1.msra.mxu0 0.0
    %71 = vmatprep.subr.mxu0 0.0
    %72 = vmatpush1.msra.mxu0 0.0
    %73 = vmatprep.subr.mxu0 0.0
    %74 = vmatpush1.msra.mxu0 0.0
    %75 = vmatprep.subr.mxu0 0.0
    %76 = vmatpush1.msra.mxu0 0.0
    %77 = vmatprep.subr.mxu0 0.0
    %78 = vmatpush1.msra.mxu0 0.0
    %79 = vmatprep.subr.mxu0 0.0
    %80 = vmatpush1.msra.mxu0 0.0
    %81 = vmatprep.subr.mxu0 0.0
    %82 = vmatpush1.msra.mxu0 0.0
    %83 = vmatprep.subr.mxu0 0.0
    %84 = vmatpush1.msra.mxu0 0.0
    %85 = vmatprep.subr.mxu0 0.0
    %86 = vmatpush1.msra.mxu0 0.0
    %87 = vmatprep.subr.mxu0 0.0
    %88 = vmatpush1.msra.mxu0 0.0
    %89 = vmatprep.subr.mxu0 0.0
    %90 = vmatpush1.msra.mxu0 0.0
    %91 = vmatprep.subr.mxu0 0.0
    %92 = vmatpush1.msra.mxu0 0.0
    %93 = vmatprep.subr.mxu0 0.0
    %94 = vmatpush1.msra.mxu0 0.0
    %95 = vmatprep.subr.mxu0 0.0
    %96 = vmatpush1.msra.mxu0 0.0
    %97 = vmatprep.subr.mxu0 0.0
    %98 = vmatpush1.msra.mxu0 0.0
    %99 = vmatprep.subr.mxu0 0.0
    %100 = vmatpush1.msra.mxu0 0.0
    %101 = vmatprep.subr.mxu0 0.0
    %102 = vmatpush1.msra.mxu0 0.0
    %103 = vmatprep.subr.mxu0 0.0
    %104 = vmatpush1.msra.mxu0 0.0
    %105 = vmatprep.subr.mxu0 0.0
    %106 = vmatpush1.msra.mxu0 0.0
    %107 = vmatprep.subr.mxu0 0.0
    %108 = vmatpush1.msra.mxu0 0.0
    %109 = vmatprep.subr.mxu0 0.0
    %110 = vmatpush1.msra.mxu0 0.0
    %111 = vmatprep.subr.mxu0 0.0
    %112 = vmatpush1.msra.mxu0 0.0
    %113 = vmatprep.subr.mxu0 0.0
    %114 = vmatpush1.msra.mxu0 0.0
    %115 = vmatprep.mubr.f32.mxu0 0.0
    %116 = vmatmul.mubr.f32.gmra.mrb[0].mxu0 %v45
    %v117 = vpop.f32.mrb[0].mxu0
    %v118 = vadd.f32 %v41, %v117
    %v119 = vpop.f32.mrb[0].mxu0
    %120 = vdwg.mxu0
    %v121 = vmax.f32 %v118, 0.0
    %v122 = vld [vmem:[%s3] sm:$0xff]
    %v123 = vld [vmem:[%s3 + $0x8] sm:$0xff]
    %v124 = vld [vmem:[%s4] sm:$0xff]
    %v125 = vld [vmem:[%s4 + $0x8] sm:$0xff]
    %127 = vset.pattern.permute.xlu0 0
    %128 = vperm.xlu0 %127, %v124
    %v129 = vpop.permute.xlu0 %128
    %132 = vset.pattern.permute.xlu0 0
    %133 = vperm.xlu0 %132, %v125
    %v134 = vpop.permute.xlu0 %133
    %vm136 = vcmask 64512
    %v138 = vsel %vm136, %v122, 0
    %v141 = vsel %vm136, %v123, 0
    %143 = vmatprep.subr.mxu0 0.0
    %144 = vmatpush1.msra.mxu0 %v121
    %145 = vmatprep.subr.mxu0 0.0
    %146 = vmatpush1.msra.mxu0 0.0
    %147 = vmatprep.subr.mxu0 0.0
    %148 = vmatpush1.msra.mxu0 0.0
    %149 = vmatprep.subr.mxu0 0.0
    %150 = vmatpush1.msra.mxu0 0.0
    %151 = vmatprep.subr.mxu0 0.0
    %152 = vmatpush1.msra.mxu0 0.0
    %153 = vmatprep.subr.mxu0 0.0
    %154 = vmatpush1.msra.mxu0 0.0
    %155 = vmatprep.subr.mxu0 0.0
    %156 = vmatpush1.msra.mxu0 0.0
    %157 = vmatprep.subr.mxu0 0.0
    %158 = vmatpush1.msra.mxu0 0.0
    %159 = vmatprep.subr.mxu0 0.0
    %160 = vmatpush1.msra.mxu0 0.0
    %161 = vmatprep.subr.mxu0 0.0
    %162 = vmatpush1.msra.mxu0 0.0
    %163 = vmatprep.subr.mxu0 0.0
    %164 = vmatpush1.msra.mxu0 0.0
    %165 = vmatprep.subr.mxu0 0.0
    %166 = vmatpush1.msra.mxu0 0.0
    %167 = vmatprep.subr.mxu0 0.0
    %168 = vmatpush1.msra.mxu0 0.0
    %169 = vmatprep.subr.mxu0 0.0
    %170 = vmatpush1.msra.mxu0 0.0
    %171 = vmatprep.subr.mxu0 0.0
    %172 = vmatpush1.msra.mxu0 0.0
    %173 = vmatprep.subr.mxu0 0.0
    %174 = vmatpush1.msra.mxu0 0.0
    %175 = vmatprep.subr.mxu0 0.0
    %176 = vmatpush1.msra.mxu0 0.0
    %177 = vmatprep.subr.mxu0 0.0
    %178 = vmatpush1.msra.mxu0 0.0
    %179 = vmatprep.subr.mxu0 0.0
    %180 = vmatpush1.msra.mxu0 0.0
    %181 = vmatprep.subr.mxu0 0.0
    %182 = vmatpush1.msra.mxu0 0.0
    %183 = vmatprep.subr.mxu0 0.0
    %184 = vmatpush1.msra.mxu0 0.0
    %185 = vmatprep.subr.mxu0 0.0
    %186 = vmatpush1.msra.mxu0 0.0
    %187 = vmatprep.subr.mxu0 0.0
    %188 = vmatpush1.msra.mxu0 0.0
    %189 = vmatprep.subr.mxu0 0.0
    %190 = vmatpush1.msra.mxu0 0.0
    %191 = vmatprep.subr.mxu0 0.0
    %192 = vmatpush1.msra.mxu0 0.0
    %193 = vmatprep.subr.mxu0 0.0
    %194 = vmatpush1.msra.mxu0 0.0
    %195 = vmatprep.subr.mxu0 0.0
    %196 = vmatpush1.msra.mxu0 0.0
    %197 = vmatprep.subr.mxu0 0.0
    %198 = vmatpush1.msra.mxu0 0.0
    %199 = vmatprep.subr.mxu0 0.0
    %200 = vmatpush1.msra.mxu0 0.0
    %201 = vmatprep.subr.mxu0 0.0
    %202 = vmatpush1.msra.mxu0 0.0
    %203 = vmatprep.subr.mxu0 0.0
    %204 = vmatpush1.msra.mxu0 0.0
    %205 = vmatprep.subr.mxu0 0.0
    %206 = vmatpush1.msra.mxu0 0.0
    %207 = vmatprep.mubr.f32.mxu0 0.0
    %208 = vmatmul.mubr.f32.gmra.mrb[0].mxu0 %v138
    %v209 = vpop.f32.mrb[0].mxu0
    %v210 = vadd.f32 %v129, %v209
    %v211 = vpop.f32.mrb[0].mxu0
    %212 = vmatprep.mubr.f32.mxu0 0.0
    %213 = vmatmul.mubr.f32.gmra.mrb[0].mxu0 %v141
    %v214 = vpop.f32.mrb[0].mxu0
    %v215 = vadd.f32 %v134, %v214
    %v216 = vpop.f32.mrb[0].mxu0
    %217 = vdwg.mxu0
    %v218 = vmax.f32 %v210, 0.0
    %v219 = vmax.f32 %v215, 0.0
    %v220 = vld [vmem:[%s5] sm:$0xf]
    %v221 = vld [vmem:[%s6] sm:$0xf]
    %223 = vset.pattern.permute.xlu0 0
    %224 = vperm.xlu0 %223, %v221
    %v225 = vpop.permute.xlu0 %224
    %vm227 = vcmask 130048
    %v229 = vsel %vm227, %v220, 0
    %231 = vmatprep.subr.mxu0 0.0
    %232 = vmatpush1.msra.mxu0 %v218
    %233 = vmatprep.subr.mxu0 0.0
    %234 = vmatpush1.msra.mxu0 %v219
    %235 = vmatprep.subr.mxu0 0.0
    %236 = vmatpush1.msra.mxu0 0.0
    %237 = vmatprep.subr.mxu0 0.0
    %238 = vmatpush1.msra.mxu0 0.0
    %239 = vmatprep.subr.mxu0 0.0
    %240 = vmatpush1.msra.mxu0 0.0
    %241 = vmatprep.subr.mxu0 0.0
    %242 = vmatpush1.msra.mxu0 0.0
    %243 = vmatprep.subr.mxu0 0.0
    %244 = vmatpush1.msra.mxu0 0.0
    %245 = vmatprep.subr.mxu0 0.0
    %246 = vmatpush1.msra.mxu0 0.0
    %247 = vmatprep.subr.mxu0 0.0
    %248 = vmatpush1.msra.mxu0 0.0
    %249 = vmatprep.subr.mxu0 0.0
    %250 = vmatpush1.msra.mxu0 0.0
    %251 = vmatprep.subr.mxu0 0.0
    %252 = vmatpush1.msra.mxu0 0.0
    %253 = vmatprep.subr.mxu0 0.0
    %254 = vmatpush1.msra.mxu0 0.0
    %255 = vmatprep.subr.mxu0 0.0
    %256 = vmatpush1.msra.mxu0 0.0
    %257 = vmatprep.subr.mxu0 0.0
    %258 = vmatpush1.msra.mxu0 0.0
    %259 = vmatprep.subr.mxu0 0.0
    %260 = vmatpush1.msra.mxu0 0.0
    %261 = vmatprep.subr.mxu0 0.0
    %262 = vmatpush1.msra.mxu0 0.0
    %263 = vmatprep.subr.mxu0 0.0
    %264 = vmatpush1.msra.mxu0 0.0
    %265 = vmatprep.subr.mxu0 0.0
    %266 = vmatpush1.msra.mxu0 0.0
    %267 = vmatprep.subr.mxu0 0.0
    %268 = vmatpush1.msra.mxu0 0.0
    %269 = vmatprep.subr.mxu0 0.0
    %270 = vmatpush1.msra.mxu0 0.0
    %271 = vmatprep.subr.mxu0 0.0
    %272 = vmatpush1.msra.mxu0 0.0
    %273 = vmatprep.subr.mxu0 0.0
    %274 = vmatpush1.msra.mxu0 0.0
    %275 = vmatprep.subr.mxu0 0.0
    %276 = vmatpush1.msra.mxu0 0.0
    %277 = vmatprep.subr.mxu0 0.0
    %278 = vmatpush1.msra.mxu0 0.0
    %279 = vmatprep.subr.mxu0 0.0
    %280 = vmatpush1.msra.mxu0 0.0
    %281 = vmatprep.subr.mxu0 0.0
    %282 = vmatpush1.msra.mxu0 0.0
    %283 = vmatprep.subr.mxu0 0.0
    %284 = vmatpush1.msra.mxu0 0.0
    %285 = vmatprep.subr.mxu0 0.0
    %286 = vmatpush1.msra.mxu0 0.0
    %287 = vmatprep.subr.mxu0 0.0
    %288 = vmatpush1.msra.mxu0 0.0
    %289 = vmatprep.subr.mxu0 0.0
    %290 = vmatpush1.msra.mxu0 0.0
    %291 = vmatprep.subr.mxu0 0.0
    %292 = vmatpush1.msra.mxu0 0.0
    %293 = vmatprep.subr.mxu0 0.0
    %294 = vmatpush1.msra.mxu0 0.0
    %295 = vmatprep.mubr.f32.mxu0 0.0
    %296 = vmatmul.mubr.f32.gmra.mrb[0].mxu0 %v229
    %v297 = vpop.f32.mrb[0].mxu0
    %v298 = vadd.f32 %v225, %v297
    %v299 = vpop.f32.mrb[0].mxu0
    %300 = vdwg.mxu0
    %v301 = vmax.f32 %v298, 0.0
    %v302 = vld [vmem:[%s7] sm:$0x1]
    %v303 = vld [vmem:[#allocation2] sm:$0x1]
    %305 = vset.pattern.permute.xlu0 0
    %306 = vperm.xlu0 %305, %v303
    %v307 = vpop.permute.xlu0 %306
    %v309 = vlaneseq
    %v310 = vshrl.u32 %v309, 7
    %v311 = vsub.s32 0, %v310
    %v312 = vrot.slane %v307, %v311
    %vm313 = vcmask 31744
    %v315 = vsel %vm313, %v302, 0
    %vm317 = vcmask 1043456
    %v319 = vsel %vm317, %v301, 0
    %321 = vmatprep.subr.mxu0 0.0
    %322 = vmatpush1.msra.mxu0 %v319
    %323 = vmatprep.subr.mxu0 0.0
    %324 = vmatpush1.msra.mxu0 0.0
    %325 = vmatprep.subr.mxu0 0.0
    %326 = vmatpush1.msra.mxu0 0.0
    %327 = vmatprep.subr.mxu0 0.0
    %328 = vmatpush1.msra.mxu0 0.0
    %329 = vmatprep.subr.mxu0 0.0
    %330 = vmatpush1.msra.mxu0 0.0
    %331 = vmatprep.subr.mxu0 0.0
    %332 = vmatpush1.msra.mxu0 0.0
    %333 = vmatprep.subr.mxu0 0.0
    %334 = vmatpush1.msra.mxu0 0.0
    %335 = vmatprep.subr.mxu0 0.0
    %336 = vmatpush1.msra.mxu0 0.0
    %337 = vmatprep.subr.mxu0 0.0
    %338 = vmatpush1.msra.mxu0 0.0
    %339 = vmatprep.subr.mxu0 0.0
    %340 = vmatpush1.msra.mxu0 0.0
    %341 = vmatprep.subr.mxu0 0.0
    %342 = vmatpush1.msra.mxu0 0.0
    %343 = vmatprep.subr.mxu0 0.0
    %344 = vmatpush1.msra.mxu0 0.0
    %345 = vmatprep.subr.mxu0 0.0
    %346 = vmatpush1.msra.mxu0 0.0
    %347 = vmatprep.subr.mxu0 0.0
    %348 = vmatpush1.msra.mxu0 0.0
    %349 = vmatprep.subr.mxu0 0.0
    %350 = vmatpush1.msra.mxu0 0.0
    %351 = vmatprep.subr.mxu0 0.0
    %352 = vmatpush1.msra.mxu0 0.0
    %353 = vmatprep.subr.mxu0 0.0
    %354 = vmatpush1.msra.mxu0 0.0
    %355 = vmatprep.subr.mxu0 0.0
    %356 = vmatpush1.msra.mxu0 0.0
    %357 = vmatprep.subr.mxu0 0.0
    %358 = vmatpush1.msra.mxu0 0.0
    %359 = vmatprep.subr.mxu0 0.0
    %360 = vmatpush1.msra.mxu0 0.0
    %361 = vmatprep.subr.mxu0 0.0
    %362 = vmatpush1.msra.mxu0 0.0
    %363 = vmatprep.subr.mxu0 0.0
    %364 = vmatpush1.msra.mxu0 0.0
    %365 = vmatprep.subr.mxu0 0.0
    %366 = vmatpush1.msra.mxu0 0.0
    %367 = vmatprep.subr.mxu0 0.0
    %368 = vmatpush1.msra.mxu0 0.0
    %369 = vmatprep.subr.mxu0 0.0
    %370 = vmatpush1.msra.mxu0 0.0
    %371 = vmatprep.subr.mxu0 0.0
    %372 = vmatpush1.msra.mxu0 0.0
    %373 = vmatprep.subr.mxu0 0.0
    %374 = vmatpush1.msra.mxu0 0.0
    %375 = vmatprep.subr.mxu0 0.0
    %376 = vmatpush1.msra.mxu0 0.0
    %377 = vmatprep.subr.mxu0 0.0
    %378 = vmatpush1.msra.mxu0 0.0
    %379 = vmatprep.subr.mxu0 0.0
    %380 = vmatpush1.msra.mxu0 0.0
    %381 = vmatprep.subr.mxu0 0.0
    %382 = vmatpush1.msra.mxu0 0.0
    %383 = vmatprep.subr.mxu0 0.0
    %384 = vmatpush1.msra.mxu0 0.0
    %385 = vmatprep.mubr.f32.mxu0 0.0
    %386 = vmatmul.mubr.f32.gmra.mrb[0].mxu0 %v315
    %v387 = vpop.f32.mrb[0].mxu0
    %v388 = vadd.f32 %v312, %v387
    %v389 = vpop.f32.mrb[0].mxu0
    %390 = vdwg.mxu0
    %391 = vst [vmem:[#allocation3] sm:$0x1] %v388
    // Predicated region
    $region38: #{tpu_custom_call.1} parent=1 // pred_check
      _
    $region39: #{tpu_custom_call.1} parent=1 // pred_check_branch
      %393 = sbr.rel (0) target = $region41
    $region40: #{tpu_custom_call.1} parent=1 // pred_region
      %s395 = ssub.s32 16, 16
      %396 = vsyncadd [#allocation4], %s395
      %s398 = sshll.u32 [#allocation3], 4
      %s399 = int_to_ptr.vmem [resolvable:$true] %s398
      %401 = dma.vmem_to_hbm [thread:$0]  %s399, 16, %s9, [#allocation4]
    $region41: #{tpu_custom_call.1} parent=1 // pred_fallthru
      _
    // Predicated region
    $region42: #{tpu_custom_call.1} parent=1 // pred_check
      _
    $region43: #{tpu_custom_call.1} parent=1 // pred_check_branch
      %403 = sbr.rel (0) target = $region45
    $region44: #{tpu_custom_call.1} parent=1 // pred_region
      %404 = dma.done [#allocation4], 16
    $region45: #{tpu_custom_call.1} parent=1 // pred_fallthru
      _
    %405 = vsyncpa [#allocation4], 1

</llo_original>
